<compile_context>
chip_gen: v7x
topology: tpu7x:2x2x1
jax: 0.10.0
libtpu: 0.0.40
codegen_flags: <defaults>
</compile_context>

<pallas_src>
import functools
import math

import jax
import jax.numpy as jnp
from jax import lax
from jax.experimental import pallas as pl
from jax.experimental.pallas import tpu as pltpu


# ----------------------------------------------------------------------------
# Tiling helpers
# ----------------------------------------------------------------------------

# ~2 MiB activation tile => <= ~8 MiB double-buffered in-flight (in + out),
# comfortably inside the default scoped-VMEM budget on v5e/v6e/v7x.
_TILE_BYTE_BUDGET = 2 * 1024 * 1024


def _divisors(n):
    ds = set()
    i = 1
    while i * i <= n:
        if n % i == 0:
            ds.add(i)
            ds.add(n // i)
        i += 1
    return sorted(ds)


def _pick_row_tile(m, row_bytes, budget):
    """Largest sublane-aligned (multiple of 8) divisor of m fitting the byte budget."""
    cands = [t for t in _divisors(m) if t % 8 == 0 and t * row_bytes <= budget]
    if cands:
        return max(cands)
    if m * row_bytes <= budget:
        return m  # full axis is always a legal block dim
    aligned = [t for t in _divisors(m) if t % 8 == 0]
    return min(aligned) if aligned else m


def _pick_batch_tile(b, row_block_bytes, budget):
    cands = [t for t in _divisors(b) if t * row_block_bytes <= budget]
    return max(cands) if cands else 1


# ----------------------------------------------------------------------------
# Kernel
# ----------------------------------------------------------------------------

def _scaled_sinu_kernel(scale_ref, offset_ref, x_ref, invf_ref, comb_ref, o_ref,
                        *, fold):
    """One (bb, tn, W) tile of the activations.

    scale_ref  : (1,)  f32  SMEM   learned scale (init dim**-0.5)
    offset_ref : (1,)  i32  SMEM   runtime position offset
    x_ref      : (bb, tn, W)       activation tile (W = fold * dim, lane-dense)
    invf_ref   : (1, W)  f32       inv_freq duplicated over halves & folds
    comb_ref   : (1, W)  f32       fold_offset * inv_freq + phase (0 | pi/2)
    o_ref      : (bb, tn, W)       output tile
    """
    j = pl.program_id(1)
    tn = x_ref.shape[1]

    # base sequence position of lane-group 0 for each (folded) row of the tile
    row = j * tn + lax.broadcasted_iota(jnp.int32, (tn, 1), 0)        # (tn, 1)
    base = (row * fold + offset_ref[0]).astype(jnp.float32)           # (tn, 1)

    # theta = pos * inv_freq (+ pi/2 on the cos half);  cos(t) == sin(t + pi/2)
    theta = base * invf_ref[...] + comb_ref[...]                      # (tn, W) f32
    emb = (jnp.sin(theta) * scale_ref[0]).astype(o_ref.dtype)         # cast once

    # broadcast the (tn, W) embedding over the bb batch rows; add in x's dtype
    o_ref[...] = x_ref[...] + emb[None, :, :]


# ----------------------------------------------------------------------------
# Wrapper
# ----------------------------------------------------------------------------

def scaled_sinusoidal_embedding(x, scale, inv_freq, offset=0):
    """x: (B, N, D); scale: scalar; inv_freq: (D//2,). Returns (B, N, D)."""
    b, n, d = x.shape
    half = d // 2
    assert d % 2 == 0 and inv_freq.shape == (half,)

    # lane-dense folding: view (B, N, D) as (B, N//fold, fold*D), fold*D % 128 == 0
    fold = 1
    if d % 128 != 0:
        cand = 128 // math.gcd(d, 128)
        if n % cand == 0:
            fold = cand
    w = fold * d
    m = n // fold

    # tiny per-lane tables (computed once in the wrapper, DMA'd per grid step)
    invf_full = jnp.concatenate([inv_freq, inv_freq]).astype(jnp.float32)     # (D,)
    phase = jnp.concatenate([jnp.zeros((half,), jnp.float32),
                             jnp.full((half,), 0.5 * math.pi, jnp.float32)])  # (D,)
    invf_row = jnp.tile(invf_full, fold)                                      # (W,)
    fold_off = jnp.repeat(jnp.arange(fold, dtype=jnp.float32), d)             # (W,)
    comb_row = fold_off * invf_row + jnp.tile(phase, fold)                    # (W,)

    scale1 = jnp.asarray(scale, jnp.float32).reshape(1)
    off1 = jnp.asarray(offset, jnp.int32).reshape(1)

    # byte-budget-aware tile sizing
    dtype_bytes = jnp.dtype(x.dtype).itemsize
    row_bytes = w * dtype_bytes
    tn = _pick_row_tile(m, row_bytes, _TILE_BYTE_BUDGET)
    bb = _pick_batch_tile(b, tn * row_bytes, _TILE_BYTE_BUDGET)
    # keep >=2 grid steps so both v7x TensorCores get work (no-op on v5e/v6e)
    if (b // bb) * (m // tn) < 2:
        if bb % 2 == 0 and bb > 1:
            bb //= 2
        elif tn % 16 == 0:
            tn //= 2

    tile_bytes = bb * tn * w * dtype_bytes
    vmem_limit = int(min(48 << 20, max(16 << 20, 6 * tile_bytes + (2 << 20))))

    xr = x.reshape(b, m, w)
    kernel = functools.partial(_scaled_sinu_kernel, fold=fold)
    out = pl.pallas_call(
        kernel,
        out_shape=jax.ShapeDtypeStruct((b, m, w), x.dtype),
        grid=(b // bb, m // tn),
        in_specs=[
            pl.BlockSpec(memory_space=pltpu.MemorySpace.SMEM),   # scale (scalar)
            pl.BlockSpec(memory_space=pltpu.MemorySpace.SMEM),   # offset (scalar)
            pl.BlockSpec((bb, tn, w), lambda i, j: (i, j, 0)),   # x tile
            pl.BlockSpec((1, w), lambda i, j: (0, 0)),           # inv_freq row
            pl.BlockSpec((1, w), lambda i, j: (0, 0)),           # phase/fold row
        ],
        out_specs=pl.BlockSpec((bb, tn, w), lambda i, j: (i, j, 0)),
        compiler_params=pltpu.CompilerParams(
            dimension_semantics=("parallel", "parallel"),
            vmem_limit_bytes=vmem_limit),
    )(scale1, off1, xr, invf_row.reshape(1, w), comb_row.reshape(1, w))
    return out.reshape(b, n, d)


# ----------------------------------------------------------------------------
# Pure-JAX reference (mirrors the PyTorch module exactly, default path)
# ----------------------------------------------------------------------------

def reference_forward(x, scale, inv_freq, offset=0):
    n = x.shape[1]
    pos = jnp.arange(n, dtype=jnp.float32) + offset
    emb = pos[:, None] * inv_freq[None, :].astype(jnp.float32)
    emb = jnp.concatenate([jnp.sin(emb), jnp.cos(emb)], axis=-1) * jnp.float32(scale)
    return x + emb[None].astype(x.dtype)


# ----------------------------------------------------------------------------

if __name__ == "__main__":
    batch, seq_len, dim = 2, 16, 64
    theta = 10000.0

    key = jax.random.PRNGKey(0)
    x = jax.random.normal(key, (batch, seq_len, dim), jnp.float32)

    # module parameters / buffers (init as in the PyTorch module)
    scale = jnp.float32(dim ** -0.5)
    half_dim = dim // 2
    freq_seq = jnp.arange(half_dim, dtype=jnp.float32) / half_dim
    inv_freq = theta ** (-freq_seq)

    fwd = jax.jit(lambda xx, off: scaled_sinusoidal_embedding(xx, scale, inv_freq, off))

    # default path (offset = 0)
    out = fwd(x, 0)
    jax.block_until_ready(out)
    ref = reference_forward(x, scale, inv_freq, 0)
    assert out.shape == (batch, seq_len, dim)
    assert bool(jnp.all(jnp.isfinite(out)))
    assert bool(jnp.allclose(out, ref, atol=1e-4, rtol=1e-4))

    # runtime offset (SMEM scalar -> same compiled kernel, no recompile)
    out5 = fwd(x, 5)
    jax.block_until_ready(out5)
    ref5 = reference_forward(x, scale, inv_freq, 5)
    assert bool(jnp.allclose(out5, ref5, atol=1e-4, rtol=1e-4))

    # bf16 activation path (emb cast once per (tn, W) block, add done in bf16)
    xb = x.astype(jnp.bfloat16)
    outb = scaled_sinusoidal_embedding(xb, scale, inv_freq)
    jax.block_until_ready(outb)
    refb = reference_forward(xb, scale, inv_freq)
    assert bool(jnp.allclose(outb.astype(jnp.float32), refb.astype(jnp.float32),
                             atol=5e-2, rtol=5e-2))

    print("KERNEL_OK")
</pallas_src>

<mosaic_0001>
module attributes {stable_mosaic.version = 11 : i64} {
  func.func @_scaled_sinu_kernel(%arg0: i32, %arg1: i32, %arg2: memref<1xf32, #tpu.memory_space<smem>>, %arg3: memref<1xi32, #tpu.memory_space<smem>>, %arg4: memref<1x8x128xf32, #tpu.memory_space<vmem>>, %arg5: memref<1x128xf32, #tpu.memory_space<vmem>>, %arg6: memref<1x128xf32, #tpu.memory_space<vmem>>, %arg7: memref<1x8x128xf32, #tpu.memory_space<vmem>>) attributes {dimension_semantics = [#tpu.dimension_semantics<parallel>, #tpu.dimension_semantics<parallel>], iteration_bounds = array<i64: 2, 1>, scalar_prefetch = 0 : i64, scratch_operands = 0 : i64, tpu.core_type = #tpu.core_type<tc>, window_params = [{transform_indices = @transform_0, window_bounds = array<i64: 1>}, {transform_indices = @transform_1, window_bounds = array<i64: 1>}, {transform_indices = @transform_2, window_bounds = array<i64: 1, 8, 128>}, {pipeline_mode = #tpu.pipeline_mode<synchronous>, transform_indices = @transform_3, window_bounds = array<i64: 1, 128>}, {pipeline_mode = #tpu.pipeline_mode<synchronous>, transform_indices = @transform_4, window_bounds = array<i64: 1, 128>}, {transform_indices = @transform_5, window_bounds = array<i64: 1, 8, 128>}]} {
    %c8_i32 = arith.constant 8 : i32
    %0 = arith.muli %arg1, %c8_i32 : i32
    %1 = tpu.iota {dimensions = array<i32: 0>} : vector<8x1xi32>
    %2 = vector.broadcast %0 : i32 to vector<8x1xi32>
    %3 = arith.addi %2, %1 : vector<8x1xi32>
    %c2_i32 = arith.constant 2 : i32
    %4 = vector.broadcast %c2_i32 : i32 to vector<8x1xi32>
    %5 = arith.muli %3, %4 : vector<8x1xi32>
    %c0 = arith.constant 0 : index
    %6 = memref.load %arg3[%c0] : memref<1xi32, #tpu.memory_space<smem>>
    %7 = vector.broadcast %6 : i32 to vector<8x1xi32>
    %8 = arith.addi %5, %7 : vector<8x1xi32>
    %9 = arith.sitofp %8 : vector<8x1xi32> to vector<8x1xf32>
    %c0_0 = arith.constant 0 : index
    %c0_1 = arith.constant 0 : index
    %10 = vector.load %arg5[%c0_0, %c0_1] : memref<1x128xf32, #tpu.memory_space<vmem>>, vector<1x128xf32>
    %11 = vector.broadcast %9 : vector<8x1xf32> to vector<8x128xf32>
    %12 = vector.broadcast %10 : vector<1x128xf32> to vector<8x128xf32>
    %13 = arith.mulf %11, %12 : vector<8x128xf32>
    %c0_2 = arith.constant 0 : index
    %c0_3 = arith.constant 0 : index
    %14 = vector.load %arg6[%c0_2, %c0_3] : memref<1x128xf32, #tpu.memory_space<vmem>>, vector<1x128xf32>
    %15 = vector.broadcast %14 : vector<1x128xf32> to vector<8x128xf32>
    %16 = arith.addf %13, %15 : vector<8x128xf32>
    %17 = math.sin %16 : vector<8x128xf32>
    %c0_4 = arith.constant 0 : index
    %18 = memref.load %arg2[%c0_4] : memref<1xf32, #tpu.memory_space<smem>>
    %19 = vector.broadcast %18 : f32 to vector<8x128xf32>
    %20 = arith.mulf %17, %19 : vector<8x128xf32>
    %c0_5 = arith.constant 0 : index
    %c0_6 = arith.constant 0 : index
    %c0_7 = arith.constant 0 : index
    %21 = vector.load %arg4[%c0_5, %c0_6, %c0_7] : memref<1x8x128xf32, #tpu.memory_space<vmem>>, vector<1x8x128xf32>
    %22 = vector.shape_cast %20 : vector<8x128xf32> to vector<1x8x128xf32>
    %23 = arith.addf %21, %22 : vector<1x8x128xf32>
    %c0_8 = arith.constant 0 : index
    %c0_9 = arith.constant 0 : index
    %c0_10 = arith.constant 0 : index
    %24 = vector.load %arg7[%c0_8, %c0_9, %c0_10] : memref<1x8x128xf32, #tpu.memory_space<vmem>>, vector<1x8x128xf32>
    tpu.vector_store %arg7[%c0_8, %c0_9, %c0_10], %23 {strides = array<i32>} : memref<1x8x128xf32, #tpu.memory_space<vmem>>, vector<1x8x128xf32>,
    return
  }
  func.func @transform_0(%arg0: i32, %arg1: i32) -> i32 {
    %c0_i32 = arith.constant 0 : i32
    %c0_i32_0 = arith.constant 0 : i32
    return %c0_i32 : i32
  }
  func.func @transform_1(%arg0: i32, %arg1: i32) -> i32 {
    %c0_i32 = arith.constant 0 : i32
    %c0_i32_0 = arith.constant 0 : i32
    return %c0_i32 : i32
  }
  func.func @transform_2(%arg0: i32, %arg1: i32) -> (i32, i32, i32) {
    %c0_i32 = arith.constant 0 : i32
    %c0_i32_0 = arith.constant 0 : i32
    return %arg0, %arg1, %c0_i32 : i32, i32, i32
  }
  func.func @transform_3(%arg0: i32, %arg1: i32) -> (i32, i32) {
    %c0_i32 = arith.constant 0 : i32
    %c0_i32_0 = arith.constant 0 : i32
    %c0_i32_1 = arith.constant 0 : i32
    return %c0_i32, %c0_i32_0 : i32, i32
  }
  func.func @transform_4(%arg0: i32, %arg1: i32) -> (i32, i32) {
    %c0_i32 = arith.constant 0 : i32
    %c0_i32_0 = arith.constant 0 : i32
    %c0_i32_1 = arith.constant 0 : i32
    return %c0_i32, %c0_i32_0 : i32, i32
  }
  func.func @transform_5(%arg0: i32, %arg1: i32) -> (i32, i32, i32) {
    %c0_i32 = arith.constant 0 : i32
    %c0_i32_0 = arith.constant 0 : i32
    return %arg0, %arg1, %c0_i32 : i32, i32, i32
  }
}

</mosaic_0001>

<llo_original>
// kernel: tile.11
$region0: #{tile.11}
  #allocation0 [shape = 's32[1]{0}', space=sflag, size = 0x4, scoped, tag = 'scoped memory for tile.11']
  %s0 = inlined_call_operand.vmem [shape: f32[64], index: 0, kind: input, shape index: {}]
  %s1 = inlined_call_operand.vmem [shape: f32[2,64], index: 1, kind: output, shape index: {}]
  // Predicated region
  $region2: #{tile.11} parent=0 // pred_check
    _
  $region3: #{tile.11} parent=0 // pred_check_branch
    %3 = sbr.rel (0) target = $region5
  $region4: #{tile.11} parent=0 // pred_region
    _
  $region5: #{tile.11} parent=0 // pred_fallthru
    _
  %v4 = vld [vmem:[%s0] ss:$0 sm:$0xff]
  %5 = vst [vmem:[%s1] sm:$0x3] %v4

// kernel: tile.17
$region0: #{tile.17}
  %s0 = inlined_call_operand.vmem [shape: f32[2,64], index: 0, kind: input, shape index: {}]
  %s1 = inlined_call_operand.vmem [shape: f32[1,128], index: 1, kind: output, shape index: {}]
  $region1: #{tile.17} parent=0
    #allocation0 [shape = 'u8[4096]{0}', space=vmem, size = 0x1000, scoped, tag = 'scoped mem for output reshape']
    #allocation1 [shape = 'u8[4096]{0}', space=vmem, size = 0x1000, scoped, tag = 'scoped mem for input reshape']
    %s3 = sshllo.u32 0, 2
    %v4 = vld [vmem:[%s0] sm:%s3]
    %5 = vst [vmem:[#allocation1] sm:%s3] %v4
    %v6 = vld [vmem:[#allocation1] sm:$0x1]
    %vm7 = vcmask 523264
    %8 = vst.msk [vmem:[#allocation0] sm:$0x1] %vm7, %v6
    %s9 = scalar_lea.vmem [#allocation1], 1
    %v10 = vld [vmem:[%s9] sm:$0x1]
    %11 = vrot.lane.b32.xlu0 %v10, 64
    %v12 = vpop.permute.xlu0 %11
    %vm13 = vcmask 1048064
    %14 = vst.msk [vmem:[#allocation0] sm:$0x1] %vm13, %v12
    %s16 = sshllo.u32 0, 1
    %v18 = vld [vmem:[#allocation0] sm:%s16]
    %s19 = sshllo.u32 0, 1
    %20 = vst [vmem:[%s1] sm:%s19] %v18

// kernel: _lambda_.1
$region0: #{_lambda_.1}
  #allocation0 [shape = 'u32[]', space=smem, size = 0x4, offset = 0x4, fixed_abs, tag = 'smem constant byte address 0x4 - core index']
  #allocation1 [shape = 'u32[144,128]{1,0:T(1,128)}', space=vmem, size = 0x12000, scoped, tag = 'internal scratch']
  #allocation2 [shape = 'f32[1]{0:T(128)S(6)}', space=smem, size = 0x200, scoped, tag = 'scoped memory for _lambda_.1']
  #allocation3 [shape = 's32[1]{0:T(128)S(6)}', space=smem, size = 0x200, scoped, tag = 'scoped memory for _lambda_.1']
  %s0 = inlined_call_operand.<no memory space> [shape: f32[1], index: 0, kind: input, shape index: {}]
  %s1 = inlined_call_operand.<no memory space> [shape: s32[1], index: 1, kind: input, shape index: {}]
  %s2 = inlined_call_operand.vmem [shape: f32[2,8,128], index: 2, kind: input, shape index: {}]
  %s3 = inlined_call_operand.vmem [shape: f32[1,128], index: 3, kind: input, shape index: {}]
  %s4 = inlined_call_operand.vmem [shape: f32[1,128], index: 4, kind: input, shape index: {}]
  %s5 = inlined_call_operand.vmem [shape: f32[2,8,128], index: 5, kind: output, shape index: {}]
  %s6 = sld [smem:[#allocation0]]
  $region53: #{_lambda_.1} parent=0
    _
  %s8 = ssub.s32 1, %s6
  %s9 = scalar_select 0, %s8, %s6
  %10 = sst [smem:[#allocation2]] %s0
  %11 = sst [smem:[#allocation3]] %s1
  loop: start=0, step=1, limit=4
  $region2: #{_lambda_.1} parent=0 // loop_pre_header
    _
  $region3: #{_lambda_.1} parent=0 // loop_header
    %s13 = sphi 0, %s17
    %p14 = scmp.ge.s32.totalorder %s13, 4
    %s20 = sphi 0, %s32
    %s21 = sphi 0, %s28
    %s22 = sphi 0, %s20
    %s23 = sphi 0, %s21
    %s24 = sphi 0, %s22
    %s25 = sphi 0, %s23
    %s33 = sphi 0, %s33
    %s35 = sphi 0, %s33
    %s36 = sphi 0, %s35
    %s50 = sphi 0, %s36
    %s54 = sphi 0, %s54
    %s56 = sphi 0, %s54
    %s57 = sphi 0, %s56
    %s71 = sphi 0, %s57
    %s79 = sphi 0, %s81
    %s82 = sphi 0, %s79
    %s83 = sphi 0, %s82
    %s99 = sphi 0, %s83
    %s103 = sphi 0, %s103
    %s105 = sphi 0, %s103
    %s106 = sphi 0, %s105
    %s120 = sphi 0, %s106
    %s124 = sphi 0, %s124
    %s126 = sphi 0, %s124
    %s127 = sphi 0, %s126
    %s141 = sphi 0, %s127
    %s149 = sphi 0, %s151
    %s152 = sphi 0, %s149
    %s153 = sphi 0, %s152
    %s169 = sphi 0, %s153
  $region4: #{_lambda_.1} parent=0 // loop_header_branch
    %16 = sbr.rel (%p14) target = $region8
  $region5: #{_lambda_.1} parent=0 // loop_body
    %s18 = ssub.s32 %s13, 1
    %s19 = ssub.s32 %s13, 2
    %s26 = sadd.s32 1, %s21
    %p27 = scmp.ge.s32.totalorder %s26, 1
    %s28 = scalar_select %p27, 0, %s26
    %s29 = sadd.s32 1, %s20
    %s30 = scalar_select %p27, %s29, %s20
    %p31 = scmp.ge.s32.totalorder %s30, 2
    %s32 = scalar_select %p31, 0, %s30
    %s34 = sadd.s32 %s33, 1
    %p37 = scmp.eq.s32.totalorder %s13, 1
    %p38 = scmp.ne.s32.totalorder %s33, %s35
    %p39 = scmp.eq.s32.totalorder %s13, 0
    %p40 = por %p38, %p39
    %p41 = scmp.ne.s32.totalorder %s33, %s35
    %p42 = scmp.eq.s32.totalorder %s18, 1
    %p43 = por %p41, %p42
    %p44 = scmp.ne.s32.totalorder %s35, %s36
    %p45 = scmp.eq.s32.totalorder %s18, 0
    %p46 = por %p44, %p45
    %p47 = scmp.ne.s32.totalorder %s35, %s36
    %p48 = scmp.eq.s32.totalorder %s19, 1
    %p49 = por %p47, %p48
    %p51 = scmp.ne.s32.totalorder %s36, %s50
    %p52 = scmp.eq.s32.totalorder %s19, 0
    %p53 = por %p51, %p52
    %s55 = sadd.s32 %s54, 1
    %p58 = scmp.eq.s32.totalorder %s13, 1
    %p59 = scmp.ne.s32.totalorder %s54, %s56
    %p60 = scmp.eq.s32.totalorder %s13, 0
    %p61 = por %p59, %p60
    %p62 = scmp.ne.s32.totalorder %s54, %s56
    %p63 = scmp.eq.s32.totalorder %s18, 1
    %p64 = por %p62, %p63
    %p65 = scmp.ne.s32.totalorder %s56, %s57
    %p66 = scmp.eq.s32.totalorder %s18, 0
    %p67 = por %p65, %p66
    %p68 = scmp.ne.s32.totalorder %s56, %s57
    %p69 = scmp.eq.s32.totalorder %s19, 1
    %p70 = por %p68, %p69
    %p72 = scmp.ne.s32.totalorder %s57, %s71
    %p73 = scmp.eq.s32.totalorder %s19, 0
    %p74 = por %p72, %p73
    %s75 = ssub.s32 %s20, %s32
    %s76 = ssub.s32 %s21, %s28
    %s77 = sor.u32 %s75, %s76
    %p78 = scmp.eq.s32.totalorder %s77, 0
    %s80 = sadd.s32 %s79, 1
    %s81 = scalar_select %p78, %s79, %s80
    %p84 = pneg %p78
    %p85 = scmp.eq.s32.totalorder %s13, 1
    %p86 = por %p84, %p85
    %p87 = scmp.ne.s32.totalorder %s79, %s82
    %p88 = scmp.eq.s32.totalorder %s13, 0
    %p89 = por %p87, %p88
    %p90 = scmp.ne.s32.totalorder %s79, %s82
    %p91 = scmp.eq.s32.totalorder %s18, 1
    %p92 = por %p90, %p91
    %p93 = scmp.ne.s32.totalorder %s82, %s83
    %p94 = scmp.eq.s32.totalorder %s18, 0
    %p95 = por %p93, %p94
    %p96 = scmp.ne.s32.totalorder %s82, %s83
    %p97 = scmp.eq.s32.totalorder %s19, 1
    %p98 = por %p96, %p97
    %p100 = scmp.ne.s32.totalorder %s83, %s99
    %p101 = scmp.eq.s32.totalorder %s19, 0
    %p102 = por %p100, %p101
    %s104 = sadd.s32 %s103, 1
    %p107 = scmp.eq.s32.totalorder %s13, 1
    %p108 = scmp.ne.s32.totalorder %s103, %s105
    %p109 = scmp.eq.s32.totalorder %s13, 0
    %p110 = por %p108, %p109
    %p111 = scmp.ne.s32.totalorder %s103, %s105
    %p112 = scmp.eq.s32.totalorder %s18, 1
    %p113 = por %p111, %p112
    %p114 = scmp.ne.s32.totalorder %s105, %s106
    %p115 = scmp.eq.s32.totalorder %s18, 0
    %p116 = por %p114, %p115
    %p117 = scmp.ne.s32.totalorder %s105, %s106
    %p118 = scmp.eq.s32.totalorder %s19, 1
    %p119 = por %p117, %p118
    %p121 = scmp.ne.s32.totalorder %s106, %s120
    %p122 = scmp.eq.s32.totalorder %s19, 0
    %p123 = por %p121, %p122
    %s125 = sadd.s32 %s124, 1
    %p128 = scmp.eq.s32.totalorder %s13, 1
    %p129 = scmp.ne.s32.totalorder %s124, %s126
    %p130 = scmp.eq.s32.totalorder %s13, 0
    %p131 = por %p129, %p130
    %p132 = scmp.ne.s32.totalorder %s124, %s126
    %p133 = scmp.eq.s32.totalorder %s18, 1
    %p134 = por %p132, %p133
    %p135 = scmp.ne.s32.totalorder %s126, %s127
    %p136 = scmp.eq.s32.totalorder %s18, 0
    %p137 = por %p135, %p136
    %p138 = scmp.ne.s32.totalorder %s126, %s127
    %p139 = scmp.eq.s32.totalorder %s19, 1
    %p140 = por %p138, %p139
    %p142 = scmp.ne.s32.totalorder %s127, %s141
    %p143 = scmp.eq.s32.totalorder %s19, 0
    %p144 = por %p142, %p143
    %s145 = ssub.s32 %s20, %s32
    %s146 = ssub.s32 %s21, %s28
    %s147 = sor.u32 %s145, %s146
    %p148 = scmp.eq.s32.totalorder %s147, 0
    %s150 = sadd.s32 %s149, 1
    %s151 = scalar_select %p148, %s149, %s150
    %p154 = pneg %p148
    %p155 = scmp.eq.s32.totalorder %s13, 1
    %p156 = por %p154, %p155
    %p157 = scmp.ne.s32.totalorder %s149, %s152
    %p158 = scmp.eq.s32.totalorder %s13, 0
    %p159 = por %p157, %p158
    %p160 = scmp.ne.s32.totalorder %s149, %s152
    %p161 = scmp.eq.s32.totalorder %s18, 1
    %p162 = por %p160, %p161
    %p163 = scmp.ne.s32.totalorder %s152, %s153
    %p164 = scmp.eq.s32.totalorder %s18, 0
    %p165 = por %p163, %p164
    %p166 = scmp.ne.s32.totalorder %s152, %s153
    %p167 = scmp.eq.s32.totalorder %s19, 1
    %p168 = por %p166, %p167
    %p170 = scmp.ne.s32.totalorder %s153, %s169
    %p171 = scmp.eq.s32.totalorder %s19, 0
    %p172 = por %p170, %p171
    %p173 = scmp.le.s32.totalorder 1, %s13
    %p174 = scmp.lt.s32.totalorder %s13, 3
    %p175 = pnand %p173, %p174
    %p176 = pneg %p175
    // Predicated region
    $region9: #{_lambda_.1} parent=5 // pred_check
      _
    $region10: #{_lambda_.1} parent=5 // pred_check_branch
      %178 = sbr.rel (%p175) target = $region12
    $region11: #{_lambda_.1} parent=5 // pred_region
      %s179 = ssub.s32 %s13, 1
      // Predicated region
      $region13: #{_lambda_.1} parent=11 // pred_check
        %p180 = pneg %p46
      $region14: #{_lambda_.1} parent=11 // pred_check_branch
        %182 = sbr.rel (%p180) target = $region16
      $region15: #{_lambda_.1} parent=11 // pred_region
        _
      $region16: #{_lambda_.1} parent=11 // pred_fallthru
        _
      // Predicated region
      $region17: #{_lambda_.1} parent=11 // pred_check
        %p183 = pneg %p67
      $region18: #{_lambda_.1} parent=11 // pred_check_branch
        %185 = sbr.rel (%p183) target = $region20
      $region19: #{_lambda_.1} parent=11 // pred_region
        _
      $region20: #{_lambda_.1} parent=11 // pred_fallthru
        _
      // Predicated region
      $region21: #{_lambda_.1} parent=11 // pred_check
        %p186 = pneg %p116
      $region22: #{_lambda_.1} parent=11 // pred_check_branch
        %188 = sbr.rel (%p186) target = $region24
      $region23: #{_lambda_.1} parent=11 // pred_region
        _
      $region24: #{_lambda_.1} parent=11 // pred_fallthru
        _
      // Predicated region
      $region25: #{_lambda_.1} parent=11 // pred_check
        %p189 = pneg %p137
      $region26: #{_lambda_.1} parent=11 // pred_check_branch
        %191 = sbr.rel (%p189) target = $region28
      $region27: #{_lambda_.1} parent=11 // pred_region
        _
      $region28: #{_lambda_.1} parent=11 // pred_fallthru
        _
    $region12: #{_lambda_.1} parent=5 // pred_fallthru
      _
    %p192 = scmp.lt.s32.totalorder %s13, 2
    // Predicated region
    $region29: #{_lambda_.1} parent=5 // pred_check
      %p193 = pneg %p192
    $region30: #{_lambda_.1} parent=5 // pred_check_branch
      %195 = sbr.rel (%p193) target = $region32
    $region31: #{_lambda_.1} parent=5 // pred_region
      // Predicated region
      $region33: #{_lambda_.1} parent=31 // pred_check
        %p196 = pneg %p89
      $region34: #{_lambda_.1} parent=31 // pred_check_branch
        %198 = sbr.rel (%p196) target = $region36
      $region35: #{_lambda_.1} parent=31 // pred_region
        %p199 = scmp.lt.s32.totalorder %s20, 1
        %s200 = scalar_select %p199, %s20, 1
        %p201 = scmp.lt.s32.totalorder %s21, 0
        %s202 = scalar_select %p201, %s21, 0
        %s203 = sadd.s32 %s202, %s200
        %s204 = smul.addr %s203, 8
        %s205 = scalar_lea.vmem %s2, %s204
      $region36: #{_lambda_.1} parent=31 // pred_fallthru
        _
    $region32: #{_lambda_.1} parent=5 // pred_fallthru
      _
    %p206 = scmp.le.s32.totalorder 1, %s13
    %p207 = scmp.lt.s32.totalorder %s13, 3
    %p208 = pnand %p206, %p207
    %p209 = pneg %p208
    // Predicated region
    $region37: #{_lambda_.1} parent=5 // pred_check
      _
    $region38: #{_lambda_.1} parent=5 // pred_check_branch
      %211 = sbr.rel (%p208) target = $region40
    $region39: #{_lambda_.1} parent=5 // pred_region
      %s212 = ssub.s32 %s13, 1
      %p213 = pneg %p46
      %p214 = pneg %p43
      %p215 = pneg %p67
      %p216 = pneg %p64
      %p217 = scmp.lt.s32.totalorder %s22, 1
      %s218 = scalar_select %p217, %s22, 1
      %p219 = scmp.lt.s32.totalorder %s23, 0
      %s220 = scalar_select %p219, %s23, 0
      %s221 = sadd.s32 %s220, %s218
      %s222 = smul.addr %s221, 8
      %s223 = scalar_lea.vmem %s2, %s222
      %p224 = pneg %p95
      %p225 = pneg %p92
      %p226 = pneg %p116
      %p227 = pneg %p113
      %p228 = pneg %p137
      %p229 = pneg %p134
      %p230 = pneg %p165
      %p231 = pneg %p162
      %p232 = scmp.lt.s32.totalorder %s22, 1
      %s233 = scalar_select %p232, %s22, 1
      %p234 = scmp.lt.s32.totalorder %s23, 0
      %s235 = scalar_select %p234, %s23, 0
      %s236 = sadd.s32 %s235, %s233
      %s237 = smul.addr %s236, 8
      %s238 = scalar_lea.vmem %s5, %s237
      %p239 = scmp.lt.s32.totalorder %s22, 1
      %s240 = scalar_select %p239, %s22, 1
      %p241 = scmp.lt.s32.totalorder %s23, 0
      %s242 = scalar_select %p241, %s23, 0
      %s243 = sadd.s32 %s242, %s240
      %s244 = smul.addr %s243, 8
      %s245 = scalar_lea.vmem %s2, %s244
      %p246 = scmp.lt.s32.totalorder %s22, 1
      %s247 = scalar_select %p246, %s22, 1
      %p248 = scmp.lt.s32.totalorder %s23, 0
      %s249 = scalar_select %p248, %s23, 0
      %s250 = sadd.s32 %s249, %s247
      %s251 = smul.addr %s250, 8
      %s252 = scalar_lea.vmem %s5, %s251
      %s253 = smul.u32 %s23, 8
      %v254 = vlaneseq
      %v255 = vshrl.u32 %v254, 7
      %v256 = vstv %s253
      %v257 = vadd.s32 %v256, %v255
      %v258 = vmul.u32 %v257, 2
      %s259 = sld [smem:[#allocation3]]
      %v260 = vstv %s259
      %v261 = vadd.s32 %v258, %v260
      %v262 = vcvt.s32.f32 %v261
      %v263 = vld [vmem:[%s3] sm:$0x1]
      %v265 = vlaneseq
      %v266 = vshrl.u32 %v265, 7
      %v267 = vsub.s32 0, %v266
      %v268 = vrot.slane %v263, %v267
      %v270 = vmul.f32 %v262, %v268
      %v271 = vld [vmem:[%s4] sm:$0x1]
      %v273 = vlaneseq
      %v274 = vshrl.u32 %v273, 7
      %v275 = vsub.s32 0, %v274
      %v276 = vrot.slane %v271, %v275
      %v278 = vadd.f32 %v270, %v276
      %v279 = vand.u32 2147483647, %v278
      %vm280 = vcmp.le.f32.partialorder %v279, 0.7853982
      %vm281 = vcmp.lt.s32.totalorder %v278, 0
      %v282 = vand.u32 %v278, 2139095040
      %v283 = vshrl.u32 %v282, 23
      %v284 = vsub.s32 %v283, 127
      %v285 = vand.u32 2147483647, %v278
      %v286 = vand.u32 %v285, 8388607
      %v287 = vor.u32 %v286, 8388608
      %v288 = vsub.s32 0, %v287
      %v289 = vadd.s32 %v284, 1
      %vm290 = vcmp.gt.s32.totalorder %v289, 0
      %v291 = vsel %vm290, %v289, 0
      %v292 = vshrl.u32 %v291, 5
      %v293 = vand.u32 %v291, 31
      %v294 = vsub.s32 32, %v293
      %v295 = vshrl.u32 683565275, %v294
      %v296 = vshll.u32 683565275, %v293
      %v297 = vshrl.u32 2475754826, %v294
      %v298 = vor.u32 %v296, %v297
      %v299 = vshll.u32 2475754826, %v293
      %v300 = vshrl.u32 2131351028, %v294
      %v301 = vor.u32 %v299, %v300
      %v302 = vshll.u32 2131351028, %v293
      %v303 = vshrl.u32 2102212464, %v294
      %v304 = vor.u32 %v302, %v303
      %v305 = vshll.u32 2102212464, %v293
      %v306 = vshrl.u32 920167782, %v294
      %v307 = vor.u32 %v305, %v306
      %v308 = vshll.u32 920167782, %v293
      %v309 = vshrl.u32 1326507024, %v294
      %v310 = vor.u32 %v308, %v309
      %vm311 = vcmp.lt.s32.totalorder %v292, 1
      %vm312 = vcmp.lt.s32.totalorder %v292, 2
      %vm313 = vcmp.lt.s32.totalorder %v292, 3
      %vm314 = vcmp.lt.s32.totalorder %v292, 4
      %v315 = vsel %vm311, %v295, %v298
      %v316 = vsel %vm314, %v304, 2102212464
      %v317 = vsel %vm313, %v301, %v316
      %v318 = vsel %vm312, %v315, %v317
      %v319 = vsel %vm311, %v298, %v301
      %v320 = vsel %vm314, %v307, 920167782
      %v321 = vsel %vm313, %v304, %v320
      %v322 = vsel %vm312, %v319, %v321
      %v323 = vsel %vm311, %v301, %v304
      %v324 = vsel %vm314, %v310, 1326507024
      %v325 = vsel %vm313, %v307, %v324
      %v326 = vsel %vm312, %v323, %v325
      %v327 = vshll.u32 %v287, 8
      %v328 = vmul.u32.u64.compose %v327, %v326
      %v329 = vextract.low.u32 %v328
      %v330 = vextract.high.u32 %v328
      %v331 = vmul.u32.u64.compose %v327, %v322
      %v332 = vextract.low.u32 %v331
      %v333 = vextract.high.u32 %v331
      %v334 = vmul.u32 %v327, %v318
      %v335 = vadd.s32 %v330, %v332
      %vm336 = vc.u32 %v330, %v332
      %v337 = vadd.s32 %v333, 1
      %v338 = vsel %vm336, %v337, %v333
      %v339 = vadd.s32 %v334, %v338
      %v340 = vadd.s32 %v339, 536870912
      %v341 = vshrl.u32 %v340, 30
      %v342 = vshll.u32 %v341, 30
      %v343 = vsub.s32 %v339, %v342
      %vm344 = vcmp.lt.s32.totalorder %v343, 0
      %v345 = vsub.s32 0, %v343
      %v346 = vsel %vm344, %v345, %v343
      %v347 = vclz %v346
      %v348 = vsub.s32 %v347, 2
      %vm349 = vcmp.gt.s32.totalorder 0, %v348
      %v350 = vsel %vm349, 0, %v348
      %v351 = vsub.s32 32, %v350
      %v352 = vshll.u32 %v343, %v350
      %v353 = vshrl.u32 %v335, %v351
      %v354 = vor.u32 %v352, %v353
      %v355 = vsub.s32 4294967266, %v350
      %v356 = vadd.s32 %v355, 127
      %v357 = vshll.u32 %v356, 23
      %v358 = vor.u32 4788187, %v357
      %v359 = vand.u32 2147483647, %v358
      %v361 = vcvt.s32.f32 %v354
      %v362 = vmul.f32 %v361, %v359
      %v363 = vxor.u32 %v362, 2147483648
      %v364 = vsel %vm281, %v363, %v362
      %v365 = vsub.s32 4, %v341
      %v366 = vsel %vm281, %v365, %v341
      %v367 = vsel %vm280, %v278, %v364
      %v368 = vsel %vm280, 0, %v366
      %v369 = vcosq.f32.pop %v367
      %v370 = vsinq.f32.pop %v367
      %vm371 = vweird.f32 %v278
      %v372 = vadd.s32 %v368, 3
      %v373 = vand.u32 %v372, 3
      %vm374 = vcmp.lt.s32.totalorder %v373, 2
      %vm375 = vcmp.eq.s32.totalorder %v373, 0
      %v376 = vxor.u32 %v370, 2147483648
      %v377 = vsel %vm375, %v369, %v376
      %vm378 = vcmp.eq.s32.totalorder %v373, 2
      %v379 = vxor.u32 %v369, 2147483648
      %v380 = vsel %vm378, %v379, %v370
      %v381 = vsel %vm374, %v377, %v380
      %v382 = vsel %vm371, nan, %v381
      %s383 = sld [smem:[#allocation2]]
      %v384 = vstv %s383
      %v385 = vmul.f32 %v382, %v384
      %v386 = vld [vmem:[%s245] sm:$0xff]
      %v387 = vadd.f32 %v386, %v385
      %388 = vst [vmem:[%s252] sm:$0xff] %v387
      %p389 = scmp.lt.s32.totalorder %s22, 1
      %s390 = scalar_select %p389, %s22, 1
      %p391 = scmp.lt.s32.totalorder %s23, 0
      %s392 = scalar_select %p391, %s23, 0
      %s393 = sadd.s32 %s392, %s390
      %s394 = smul.addr %s393, 8
      %s395 = scalar_lea.vmem %s5, %s394
      // Predicated region
      $region41: #{_lambda_.1} parent=39 // pred_check
        %p396 = pneg %p162
      $region42: #{_lambda_.1} parent=39 // pred_check_branch
        %398 = sbr.rel (%p396) target = $region44
      $region43: #{_lambda_.1} parent=39 // pred_region
        _
      $region44: #{_lambda_.1} parent=39 // pred_fallthru
        _
    $region40: #{_lambda_.1} parent=5 // pred_fallthru
      _
    %p399 = scmp.le.s32.totalorder 2, %s13
    // Predicated region
    $region45: #{_lambda_.1} parent=5 // pred_check
      %p400 = pneg %p399
    $region46: #{_lambda_.1} parent=5 // pred_check_branch
      %402 = sbr.rel (%p400) target = $region48
    $region47: #{_lambda_.1} parent=5 // pred_region
      %s403 = ssub.s32 %s13, 2
      // Predicated region
      $region49: #{_lambda_.1} parent=47 // pred_check
        %p404 = pneg %p168
      $region50: #{_lambda_.1} parent=47 // pred_check_branch
        %406 = sbr.rel (%p404) target = $region52
      $region51: #{_lambda_.1} parent=47 // pred_region
        %p407 = scmp.lt.s32.totalorder %s24, 1
        %s408 = scalar_select %p407, %s24, 1
        %p409 = scmp.lt.s32.totalorder %s25, 0
        %s410 = scalar_select %p409, %s25, 0
        %s411 = sadd.s32 %s410, %s408
        %s412 = smul.addr %s411, 8
        %s413 = scalar_lea.vmem %s5, %s412
      $region52: #{_lambda_.1} parent=47 // pred_fallthru
        _
    $region48: #{_lambda_.1} parent=5 // pred_fallthru
      _
  $region6: #{_lambda_.1} parent=0 // loop_footer
    %s17 = sadd.s32 1, %s13
  $region7: #{_lambda_.1} parent=0 // loop_footer_branch
    %12 = sbr.rel target = $region3
  $region8: #{_lambda_.1} parent=0 // loop_exit
    _

</llo_original>
